<compile_context>
chip_gen: v6e
topology: v6e:2x2x1
jax: 0.10.0
libtpu: 0.0.40
codegen_flags: <defaults>
</compile_context>

<pallas_src>
import jax
import jax.numpy as jnp
from jax.experimental import pallas as pl
from jax.experimental.pallas import tpu as pltpu


def _emb_add_kernel(xidx_ref, v1_ref, w_ref, out_ref):
    # xidx_ref: (bn, 1) int32 block of flattened x indices
    # v1_ref:   (bn, D) folded Embedding(constant) block
    # w_ref:    (V, D)  embedding table (resident, constant block index)
    # out_ref:  (bn, D) output block
    xi = xidx_ref[...]                       # (bn, 1)
    w = w_ref[...]                           # (V, D)
    bn = xi.shape[0]
    v = w.shape[0]

    # One-hot(x): single compare + single cast.
    ids = jax.lax.broadcasted_iota(jnp.int32, (bn, v), 1)       # (bn, V)
    onehot = (ids == xi).astype(w.dtype)                        # values in {0, 1}

    # Exact f32 gather via MXU: HIGHEST precision keeps the f32 table exact
    # (one nonzero product per output element, no accumulation error).
    v2 = jnp.dot(
        onehot, w,
        preferred_element_type=jnp.float32,
        precision=jax.lax.Precision.HIGHEST,
    )

    # v1 + v2 on the VALU (free next to the MXU work).
    out_ref[...] = (v1_ref[...].astype(jnp.float32) + v2).astype(out_ref.dtype)


def embedding_const_eval_add(x_idx, v1_const, weight, *, block_n=512):
    """Forward of ModelConstEvalPass with the constant embedding already folded.

    x_idx:    integer index array, arbitrary shape.
    v1_const: (*x_idx.shape, D) pre-gathered Embedding(self.constant).
    weight:   (V, D) float embedding table.
    Returns   (*x_idx.shape, D) = v1_const + Embedding(x_idx).
    """
    assert v1_const.shape == (*x_idx.shape, weight.shape[1])
    idx_shape = x_idx.shape
    n = 1
    for s in idx_shape:
        n *= s
    v, d = weight.shape

    x_flat = x_idx.reshape(n, 1).astype(jnp.int32)
    v1_flat = v1_const.reshape(n, d).astype(weight.dtype)

    # Block along the flattened index dim:
    #  * small N  -> single grid step, block == full array dims (no pad, no slice).
    #  * large N  -> 512-row blocks: multiple of 128 (v5e MXU M dim), large enough
    #    to amortize the ~0.35us per-step overhead, small enough that the (bn, V)
    #    one-hot temporary stays out of vreg spill.  The ragged final block is
    #    masked by the pipeliner, so no extra HBM round trips.  >=2 parallel steps
    #    also lets v7x's two TensorCores split the grid.
    bn = n if n <= block_n else block_n
    grid = (pl.cdiv(n, bn),)

    cost = pl.CostEstimate(
        flops=2 * n * v * d,
        transcendentals=0,
        bytes_accessed=2 * n * d * 4 + v * d * 4 + n * 4,
    )

    out = pl.pallas_call(
        _emb_add_kernel,
        out_shape=jax.ShapeDtypeStruct((n, d), weight.dtype),
        grid_spec=pltpu.PrefetchScalarGridSpec(
            num_scalar_prefetch=0,
            grid=grid,
            in_specs=[
                pl.BlockSpec((bn, 1), lambda i: (i, 0)),   # x indices
                pl.BlockSpec((bn, d), lambda i: (i, 0)),   # folded Embedding(const)
                # Full table, constant block index -> fetched once and re-used.
                # TODO(synk): for large V*D switch to a DMA / dynamic-row gather
                # path (one-hot matmul does V-times extra MACs) and single-buffer
                # the resident table (pipeline_mode=pl.Buffered(1)) + raise
                # vmem_limit_bytes on v7x's 64 MiB VMEM.
                pl.BlockSpec((v, d), lambda i: (0, 0)),
            ],
            out_specs=pl.BlockSpec((bn, d), lambda i: (i, 0)),
        ),
        compiler_params=pltpu.CompilerParams(
            dimension_semantics=("parallel",),
        ),
        cost_estimate=cost,
    )(x_flat, v1_flat, weight)

    return out.reshape(*idx_shape, d)


if __name__ == "__main__":
    # Module hyper-parameters (deterministic, in-script).
    num_embeddings = 64      # V
    embedding_dim = 128      # D (lane-friendly)
    index_shape = (2, 8)     # self.shape -> constant / x index shape

    key = jax.random.PRNGKey(0)
    k_const, k_x, k_w = jax.random.split(key, 3)

    # torch.randint(0, num_embeddings - 1, shape) -> values in [0, V-2]
    const_idx = jax.random.randint(
        k_const, index_shape, 0, num_embeddings - 1, dtype=jnp.int32
    )
    # input x: valid embedding indices in [0, V-1]
    x_idx = jax.random.randint(
        k_x, index_shape, 0, num_embeddings, dtype=jnp.int32
    )
    # torch.rand((V, D)) -> uniform [0, 1) float32
    weight = jax.random.uniform(
        k_w, (num_embeddings, embedding_dim), dtype=jnp.float32
    )

    # Const-eval pass: Embedding(self.constant) is a compile-time constant of the
    # module; fold it once outside the kernel.
    v1_const = weight[const_idx]

    out = embedding_const_eval_add(x_idx, v1_const, weight)
    out = jax.block_until_ready(out)

    # Reference check in plain JAX.
    ref = weight[const_idx] + weight[x_idx]
    assert out.shape == (*index_shape, embedding_dim), out.shape
    assert jnp.allclose(out, ref, atol=1e-6), "mismatch vs reference"

    print("KERNEL_OK")
</pallas_src>

<mosaic_0001>
module attributes {stable_mosaic.version = 11 : i64} {
  func.func @_emb_add_kernel(%arg0: i32, %arg1: memref<16x1xi32, #tpu.memory_space<vmem>>, %arg2: memref<16x128xf32, #tpu.memory_space<vmem>>, %arg3: memref<64x128xf32, #tpu.memory_space<vmem>>, %arg4: memref<16x128xf32, #tpu.memory_space<vmem>>) attributes {dimension_semantics = [#tpu.dimension_semantics<parallel>], iteration_bounds = array<i64: 1>, scalar_prefetch = 0 : i64, scratch_operands = 0 : i64, tpu.core_type = #tpu.core_type<tc>, window_params = [{transform_indices = @transform_0, window_bounds = array<i64: 16, 1>}, {transform_indices = @transform_1, window_bounds = array<i64: 16, 128>}, {pipeline_mode = #tpu.pipeline_mode<synchronous>, transform_indices = @transform_2, window_bounds = array<i64: 64, 128>}, {transform_indices = @transform_3, window_bounds = array<i64: 16, 128>}]} {
    %c0 = arith.constant 0 : index
    %c0_0 = arith.constant 0 : index
    %0 = vector.load %arg1[%c0, %c0_0] : memref<16x1xi32, #tpu.memory_space<vmem>>, vector<16x1xi32>
    %c0_1 = arith.constant 0 : index
    %c0_2 = arith.constant 0 : index
    %1 = vector.load %arg3[%c0_1, %c0_2] : memref<64x128xf32, #tpu.memory_space<vmem>>, vector<64x128xf32>
    %2 = tpu.iota {dimensions = array<i32: 1>} : vector<16x64xi32>
    %3 = vector.broadcast %0 : vector<16x1xi32> to vector<16x64xi32>
    %4 = arith.cmpi eq, %2, %3 : vector<16x64xi32>
    %5 = arith.extui %4 : vector<16x64xi1> to vector<16x64xi32>
    %6 = arith.sitofp %5 : vector<16x64xi32> to vector<16x64xf32>
    %cst = arith.constant dense<0.000000e+00> : vector<16x128xf32>
    %7 = tpu.matmul %6, %1, %cst {dimension_numbers = #tpu.dot_dimension_numbers<[1], [0], [0], [1], [0, 0, 1, 1], [], []>, precision = #tpu.contract_precision<fp32>} : vector<16x64xf32>, vector<64x128xf32>, vector<16x128xf32> -> vector<16x128xf32>
    %c0_3 = arith.constant 0 : index
    %c0_4 = arith.constant 0 : index
    %8 = vector.load %arg2[%c0_3, %c0_4] : memref<16x128xf32, #tpu.memory_space<vmem>>, vector<16x128xf32>
    %9 = arith.addf %8, %7 : vector<16x128xf32>
    %c0_5 = arith.constant 0 : index
    %c0_6 = arith.constant 0 : index
    %10 = vector.load %arg4[%c0_5, %c0_6] : memref<16x128xf32, #tpu.memory_space<vmem>>, vector<16x128xf32>
    tpu.vector_store %arg4[%c0_5, %c0_6], %9 {strides = array<i32>} : memref<16x128xf32, #tpu.memory_space<vmem>>, vector<16x128xf32>,
    return
  }
  func.func @transform_0(%arg0: i32) -> (i32, i32) {
    %c0_i32 = arith.constant 0 : i32
    %c0_i32_0 = arith.constant 0 : i32
    return %arg0, %c0_i32 : i32, i32
  }
  func.func @transform_1(%arg0: i32) -> (i32, i32) {
    %c0_i32 = arith.constant 0 : i32
    %c0_i32_0 = arith.constant 0 : i32
    return %arg0, %c0_i32 : i32, i32
  }
  func.func @transform_2(%arg0: i32) -> (i32, i32) {
    %c0_i32 = arith.constant 0 : i32
    %c0_i32_0 = arith.constant 0 : i32
    %c0_i32_1 = arith.constant 0 : i32
    return %c0_i32, %c0_i32_0 : i32, i32
  }
  func.func @transform_3(%arg0: i32) -> (i32, i32) {
    %c0_i32 = arith.constant 0 : i32
    %c0_i32_0 = arith.constant 0 : i32
    return %arg0, %c0_i32 : i32, i32
  }
}

</mosaic_0001>

<llo_original>
// kernel: tpu_custom_call.1
$region0: #{tpu_custom_call.1}
  #allocation0 [shape = 'u32[]', space=smem, size = 0x4, offset = 0x4, fixed_abs, tag = 'smem constant byte address 0x4 - core index']
  #allocation1 [shape = 'u32[144,128]{1,0:T(1,128)}', space=vmem, size = 0x12000, scoped, tag = 'internal scratch']
  %s0 = inlined_call_operand.vmem [shape: s32[16,1], index: 0, kind: input, shape index: {}]
  %s1 = inlined_call_operand.vmem [shape: f32[16,128], index: 1, kind: input, shape index: {}]
  %s2 = inlined_call_operand.hbm [shape: f32[64,128], index: 2, kind: input, shape index: {}]
  %s3 = inlined_call_operand.hbm [shape: f32[16,128], index: 3, kind: output, shape index: {}]
  %s4 = sld [smem:[#allocation0]]
  $region26: #{tpu_custom_call.1} parent=0
    _
  %s6 = ssub.s32 1, %s4
  %s7 = scalar_select 0, %s6, %s4
  $region1: #{tpu_custom_call.1} parent=0
    #allocation2 [shape = 'u8[32768]{0}', space=vmem, size = 0x8000, scoped, tag = 'input window, operand 2, single buffered']
    #allocation3 [shape = 's32[1]{0}', space=sflag, size = 0x4, scoped, tag = 'scoped memory for tpu_custom_call.1']
    #allocation4 [shape = 's32[1]{0}', space=sflag, size = 0x4, scoped, tag = 'scoped memory for tpu_custom_call.1']
    #allocation5 [shape = 'u8[8192]{0}', space=vmem, size = 0x2000, scoped, tag = 'output window, operand 0, single buffered']
    %8 = vsyncpa [#allocation3], 0
    %9 = vsyncpa [#allocation4], 0
    // Predicated region
    $region2: #{tpu_custom_call.1} parent=1 // pred_check
      _
    $region3: #{tpu_custom_call.1} parent=1 // pred_check_branch
      %11 = sbr.rel (0) target = $region5
    $region4: #{tpu_custom_call.1} parent=1 // pred_region
      _
    $region5: #{tpu_custom_call.1} parent=1 // pred_fallthru
      _
    // Predicated region
    $region6: #{tpu_custom_call.1} parent=1 // pred_check
      _
    $region7: #{tpu_custom_call.1} parent=1 // pred_check_branch
      %13 = sbr.rel (0) target = $region9
    $region8: #{tpu_custom_call.1} parent=1 // pred_region
      _
    $region9: #{tpu_custom_call.1} parent=1 // pred_fallthru
      _
    // Predicated region
    $region10: #{tpu_custom_call.1} parent=1 // pred_check
      _
    $region11: #{tpu_custom_call.1} parent=1 // pred_check_branch
      %15 = sbr.rel (0) target = $region13
    $region12: #{tpu_custom_call.1} parent=1 // pred_region
      %s17 = ssub.s32 1024, 1024
      %18 = vsyncadd [#allocation3], %s17
      %s19 = sshll.u32 [#allocation2], 4
      %s20 = int_to_ptr.vmem [resolvable:$true] %s19
      %25 = dma.hbm_to_vmem [thread:$0]  %s2, 1024, %s20, [#allocation3], 128, 128, 8
    $region13: #{tpu_custom_call.1} parent=1 // pred_fallthru
      _
    // Predicated region
    $region14: #{tpu_custom_call.1} parent=1 // pred_check
      _
    $region15: #{tpu_custom_call.1} parent=1 // pred_check_branch
      %27 = sbr.rel (0) target = $region17
    $region16: #{tpu_custom_call.1} parent=1 // pred_region
      %28 = dma.done [#allocation3], 1024
    $region17: #{tpu_custom_call.1} parent=1 // pred_fallthru
      _
    %v29 = vld [vmem:[%s0] sm:$0xff]
    %v30 = vld [vmem:[%s0 + $0x8] sm:$0xff]
    %v31 = vld [vmem:[#allocation2] sm:$0xff]
    %v32 = vld [vmem:[#allocation2 + $0x8] sm:$0xff]
    %v33 = vld [vmem:[#allocation2 + $0x10] sm:$0xff]
    %v34 = vld [vmem:[#allocation2 + $0x18] sm:$0xff]
    %v35 = vld [vmem:[#allocation2 + $0x20] sm:$0xff]
    %v36 = vld [vmem:[#allocation2 + $0x28] sm:$0xff]
    %v37 = vld [vmem:[#allocation2 + $0x30] sm:$0xff]
    %v38 = vld [vmem:[#allocation2 + $0x38] sm:$0xff]
    %v39 = vlaneseq
    %v40 = vand.u32 %v39, 127
    %41 = vset.pattern.permute.xlu0 0
    %42 = vperm.xlu0 %41, %v29
    %v43 = vpop.permute.xlu0 %42
    %44 = vset.pattern.permute.xlu0 0
    %45 = vperm.xlu0 %44, %v30
    %v46 = vpop.permute.xlu0 %45
    %vm47 = vcmp.eq.s32.totalorder %v40, %v43
    %vm48 = vcmp.eq.s32.totalorder %v40, %v46
    %v49 = vsel %vm47, 1, 0
    %v50 = vsel %vm48, 1, 0
    %v51 = vcvt.s32.f32 %v49
    %v52 = vcvt.s32.f32 %v50
    %vm53 = vcmask 523264
    %v55 = vsel %vm53, %v51, 0
    %v58 = vsel %vm53, %v52, 0
    %60 = vmatprep.subr.mxu0 0.0
    %61 = vmatpush1.msra.mxu0 0.0
    %62 = vmatprep.subr.mxu0 0.0
    %63 = vmatpush1.msra.mxu0 0.0
    %64 = vmatprep.subr.mxu0 0.0
    %65 = vmatpush1.msra.mxu0 0.0
    %66 = vmatprep.subr.mxu0 0.0
    %67 = vmatpush1.msra.mxu0 0.0
    %68 = vmatprep.subr.mxu0 0.0
    %69 = vmatpush1.msra.mxu0 0.0
    %70 = vmatprep.subr.mxu0 0.0
    %71 = vmatpush1.msra.mxu0 0.0
    %72 = vmatprep.subr.mxu0 0.0
    %73 = vmatpush1.msra.mxu0 0.0
    %74 = vmatprep.subr.mxu0 0.0
    %75 = vmatpush1.msra.mxu0 0.0
    %76 = vmatprep.subr.mxu0 0.0
    %v77 = vand.u32 %v38, 4294901760
    %78 = vmatpush1.msra.mxu0 %v77
    %79 = vmatprep.subr.mxu0 0.0
    %v80 = vand.u32 %v37, 4294901760
    %81 = vmatpush1.msra.mxu0 %v80
    %82 = vmatprep.subr.mxu0 0.0
    %v83 = vand.u32 %v36, 4294901760
    %84 = vmatpush1.msra.mxu0 %v83
    %85 = vmatprep.subr.mxu0 0.0
    %v86 = vand.u32 %v35, 4294901760
    %87 = vmatpush1.msra.mxu0 %v86
    %88 = vmatprep.subr.mxu0 0.0
    %v89 = vand.u32 %v34, 4294901760
    %90 = vmatpush1.msra.mxu0 %v89
    %91 = vmatprep.subr.mxu0 0.0
    %v92 = vand.u32 %v33, 4294901760
    %93 = vmatpush1.msra.mxu0 %v92
    %94 = vmatprep.subr.mxu0 0.0
    %v95 = vand.u32 %v32, 4294901760
    %96 = vmatpush1.msra.mxu0 %v95
    %97 = vmatprep.subr.mxu0 0.0
    %v98 = vand.u32 %v31, 4294901760
    %99 = vmatpush1.msra.mxu0 %v98
    %100 = vmatprep.subr.mxu0 0.0
    %101 = vmatpush2.msra.mxu0 0.0
    %102 = vmatprep.subr.mxu0 0.0
    %103 = vmatpush2.msra.mxu0 0.0
    %104 = vmatprep.subr.mxu0 0.0
    %105 = vmatpush2.msra.mxu0 0.0
    %106 = vmatprep.subr.mxu0 0.0
    %107 = vmatpush2.msra.mxu0 0.0
    %108 = vmatprep.subr.mxu0 0.0
    %109 = vmatpush2.msra.mxu0 0.0
    %110 = vmatprep.subr.mxu0 0.0
    %111 = vmatpush2.msra.mxu0 0.0
    %112 = vmatprep.subr.mxu0 0.0
    %113 = vmatpush2.msra.mxu0 0.0
    %114 = vmatprep.subr.mxu0 0.0
    %115 = vmatpush2.msra.mxu0 0.0
    %116 = vmatprep.subr.mxu0 0.0
    %117 = vmatpush2.msra.mxu0 0.0
    %118 = vmatprep.subr.mxu0 0.0
    %119 = vmatpush2.msra.mxu0 0.0
    %120 = vmatprep.subr.mxu0 0.0
    %121 = vmatpush2.msra.mxu0 0.0
    %122 = vmatprep.subr.mxu0 0.0
    %123 = vmatpush2.msra.mxu0 0.0
    %124 = vmatprep.subr.mxu0 0.0
    %125 = vmatpush2.msra.mxu0 0.0
    %126 = vmatprep.subr.mxu0 0.0
    %127 = vmatpush2.msra.mxu0 0.0
    %128 = vmatprep.subr.mxu0 0.0
    %129 = vmatpush2.msra.mxu0 0.0
    %130 = vmatprep.subr.mxu0 0.0
    %131 = vmatpush2.msra.mxu0 0.0
    %132 = vmatprep.mubr.f32.mxu0 0.0
    %v133 = vand.u32 %v55, 4294901760
    %v134 = vsub.f32 %v55, %v133
    %v135 = vand.u32 %v134, 4294901760
    %v136 = vsub.f32 %v134, %v135
    %v137 = vand.u32 %v136, 4294901760
    %138 = vmatmul.mubr.f32.gmra.mxu0 %v137
    %v139 = vpop.f32.mrf.mxu0
    %v140 = vadd.f32 0.0, %v139
    %v141 = vpop.f32.mrf.mxu0
    %142 = vmatprep.mubr.f32.mxu0 0.0
    %v143 = vand.u32 %v58, 4294901760
    %v144 = vsub.f32 %v58, %v143
    %v145 = vand.u32 %v144, 4294901760
    %v146 = vsub.f32 %v144, %v145
    %v147 = vand.u32 %v146, 4294901760
    %148 = vmatmul.mubr.f32.gmra.mxu0 %v147
    %v149 = vpop.f32.mrf.mxu0
    %v150 = vadd.f32 0.0, %v149
    %v151 = vpop.f32.mrf.mxu0
    %152 = vdwg.mxu0
    %153 = vmatprep.subr.mxu0 0.0
    %154 = vmatpush1.msra.mxu0 0.0
    %155 = vmatprep.subr.mxu0 0.0
    %156 = vmatpush1.msra.mxu0 0.0
    %157 = vmatprep.subr.mxu0 0.0
    %158 = vmatpush1.msra.mxu0 0.0
    %159 = vmatprep.subr.mxu0 0.0
    %160 = vmatpush1.msra.mxu0 0.0
    %161 = vmatprep.subr.mxu0 0.0
    %162 = vmatpush1.msra.mxu0 0.0
    %163 = vmatprep.subr.mxu0 0.0
    %164 = vmatpush1.msra.mxu0 0.0
    %165 = vmatprep.subr.mxu0 0.0
    %166 = vmatpush1.msra.mxu0 0.0
    %167 = vmatprep.subr.mxu0 0.0
    %168 = vmatpush1.msra.mxu0 0.0
    %169 = vmatprep.subr.mxu0 0.0
    %v170 = vand.u32 %v38, 4294901760
    %v171 = vsub.f32 %v38, %v170
    %v172 = vand.u32 %v171, 4294901760
    %v173 = vsub.f32 %v171, %v172
    %v174 = vand.u32 %v173, 4294901760
    %175 = vmatpush1.msra.mxu0 %v174
    %176 = vmatprep.subr.mxu0 0.0
    %v177 = vand.u32 %v37, 4294901760
    %v178 = vsub.f32 %v37, %v177
    %v179 = vand.u32 %v178, 4294901760
    %v180 = vsub.f32 %v178, %v179
    %v181 = vand.u32 %v180, 4294901760
    %182 = vmatpush1.msra.mxu0 %v181
    %183 = vmatprep.subr.mxu0 0.0
    %v184 = vand.u32 %v36, 4294901760
    %v185 = vsub.f32 %v36, %v184
    %v186 = vand.u32 %v185, 4294901760
    %v187 = vsub.f32 %v185, %v186
    %v188 = vand.u32 %v187, 4294901760
    %189 = vmatpush1.msra.mxu0 %v188
    %190 = vmatprep.subr.mxu0 0.0
    %v191 = vand.u32 %v35, 4294901760
    %v192 = vsub.f32 %v35, %v191
    %v193 = vand.u32 %v192, 4294901760
    %v194 = vsub.f32 %v192, %v193
    %v195 = vand.u32 %v194, 4294901760
    %196 = vmatpush1.msra.mxu0 %v195
    %197 = vmatprep.subr.mxu0 0.0
    %v198 = vand.u32 %v34, 4294901760
    %v199 = vsub.f32 %v34, %v198
    %v200 = vand.u32 %v199, 4294901760
    %v201 = vsub.f32 %v199, %v200
    %v202 = vand.u32 %v201, 4294901760
    %203 = vmatpush1.msra.mxu0 %v202
    %204 = vmatprep.subr.mxu0 0.0
    %v205 = vand.u32 %v33, 4294901760
    %v206 = vsub.f32 %v33, %v205
    %v207 = vand.u32 %v206, 4294901760
    %v208 = vsub.f32 %v206, %v207
    %v209 = vand.u32 %v208, 4294901760
    %210 = vmatpush1.msra.mxu0 %v209
    %211 = vmatprep.subr.mxu0 0.0
    %v212 = vand.u32 %v32, 4294901760
    %v213 = vsub.f32 %v32, %v212
    %v214 = vand.u32 %v213, 4294901760
    %v215 = vsub.f32 %v213, %v214
    %v216 = vand.u32 %v215, 4294901760
    %217 = vmatpush1.msra.mxu0 %v216
    %218 = vmatprep.subr.mxu0 0.0
    %v219 = vand.u32 %v31, 4294901760
    %v220 = vsub.f32 %v31, %v219
    %v221 = vand.u32 %v220, 4294901760
    %v222 = vsub.f32 %v220, %v221
    %v223 = vand.u32 %v222, 4294901760
    %224 = vmatpush1.msra.mxu0 %v223
    %225 = vmatprep.subr.mxu0 0.0
    %226 = vmatpush2.msra.mxu0 0.0
    %227 = vmatprep.subr.mxu0 0.0
    %228 = vmatpush2.msra.mxu0 0.0
    %229 = vmatprep.subr.mxu0 0.0
    %230 = vmatpush2.msra.mxu0 0.0
    %231 = vmatprep.subr.mxu0 0.0
    %232 = vmatpush2.msra.mxu0 0.0
    %233 = vmatprep.subr.mxu0 0.0
    %234 = vmatpush2.msra.mxu0 0.0
    %235 = vmatprep.subr.mxu0 0.0
    %236 = vmatpush2.msra.mxu0 0.0
    %237 = vmatprep.subr.mxu0 0.0
    %238 = vmatpush2.msra.mxu0 0.0
    %239 = vmatprep.subr.mxu0 0.0
    %240 = vmatpush2.msra.mxu0 0.0
    %241 = vmatprep.subr.mxu0 0.0
    %242 = vmatpush2.msra.mxu0 0.0
    %243 = vmatprep.subr.mxu0 0.0
    %244 = vmatpush2.msra.mxu0 0.0
    %245 = vmatprep.subr.mxu0 0.0
    %246 = vmatpush2.msra.mxu0 0.0
    %247 = vmatprep.subr.mxu0 0.0
    %248 = vmatpush2.msra.mxu0 0.0
    %249 = vmatprep.subr.mxu0 0.0
    %250 = vmatpush2.msra.mxu0 0.0
    %251 = vmatprep.subr.mxu0 0.0
    %252 = vmatpush2.msra.mxu0 0.0
    %253 = vmatprep.subr.mxu0 0.0
    %254 = vmatpush2.msra.mxu0 0.0
    %255 = vmatprep.subr.mxu0 0.0
    %256 = vmatpush2.msra.mxu0 0.0
    %257 = vmatprep.mubr.f32.mxu0 0.0
    %v258 = vand.u32 %v55, 4294901760
    %259 = vmatmul.mubr.f32.gmra.mxu0 %v258
    %v260 = vpop.f32.mrf.mxu0
    %v261 = vadd.f32 %v140, %v260
    %v262 = vpop.f32.mrf.mxu0
    %263 = vmatprep.mubr.f32.mxu0 0.0
    %v264 = vand.u32 %v58, 4294901760
    %265 = vmatmul.mubr.f32.gmra.mxu0 %v264
    %v266 = vpop.f32.mrf.mxu0
    %v267 = vadd.f32 %v150, %v266
    %v268 = vpop.f32.mrf.mxu0
    %269 = vdwg.mxu0
    %270 = vmatprep.subr.mxu0 0.0
    %271 = vmatpush1.msra.mxu0 0.0
    %272 = vmatprep.subr.mxu0 0.0
    %273 = vmatpush1.msra.mxu0 0.0
    %274 = vmatprep.subr.mxu0 0.0
    %275 = vmatpush1.msra.mxu0 0.0
    %276 = vmatprep.subr.mxu0 0.0
    %277 = vmatpush1.msra.mxu0 0.0
    %278 = vmatprep.subr.mxu0 0.0
    %279 = vmatpush1.msra.mxu0 0.0
    %280 = vmatprep.subr.mxu0 0.0
    %281 = vmatpush1.msra.mxu0 0.0
    %282 = vmatprep.subr.mxu0 0.0
    %283 = vmatpush1.msra.mxu0 0.0
    %284 = vmatprep.subr.mxu0 0.0
    %285 = vmatpush1.msra.mxu0 0.0
    %286 = vmatprep.subr.mxu0 0.0
    %v287 = vand.u32 %v38, 4294901760
    %v288 = vsub.f32 %v38, %v287
    %289 = vmatpush1.msra.mxu0 %v288
    %290 = vmatprep.subr.mxu0 0.0
    %v291 = vand.u32 %v37, 4294901760
    %v292 = vsub.f32 %v37, %v291
    %293 = vmatpush1.msra.mxu0 %v292
    %294 = vmatprep.subr.mxu0 0.0
    %v295 = vand.u32 %v36, 4294901760
    %v296 = vsub.f32 %v36, %v295
    %297 = vmatpush1.msra.mxu0 %v296
    %298 = vmatprep.subr.mxu0 0.0
    %v299 = vand.u32 %v35, 4294901760
    %v300 = vsub.f32 %v35, %v299
    %301 = vmatpush1.msra.mxu0 %v300
    %302 = vmatprep.subr.mxu0 0.0
    %v303 = vand.u32 %v34, 4294901760
    %v304 = vsub.f32 %v34, %v303
    %305 = vmatpush1.msra.mxu0 %v304
    %306 = vmatprep.subr.mxu0 0.0
    %v307 = vand.u32 %v33, 4294901760
    %v308 = vsub.f32 %v33, %v307
    %309 = vmatpush1.msra.mxu0 %v308
    %310 = vmatprep.subr.mxu0 0.0
    %v311 = vand.u32 %v32, 4294901760
    %v312 = vsub.f32 %v32, %v311
    %313 = vmatpush1.msra.mxu0 %v312
    %314 = vmatprep.subr.mxu0 0.0
    %v315 = vand.u32 %v31, 4294901760
    %v316 = vsub.f32 %v31, %v315
    %317 = vmatpush1.msra.mxu0 %v316
    %318 = vmatprep.subr.mxu0 0.0
    %319 = vmatpush2.msra.mxu0 0.0
    %320 = vmatprep.subr.mxu0 0.0
    %321 = vmatpush2.msra.mxu0 0.0
    %322 = vmatprep.subr.mxu0 0.0
    %323 = vmatpush2.msra.mxu0 0.0
    %324 = vmatprep.subr.mxu0 0.0
    %325 = vmatpush2.msra.mxu0 0.0
    %326 = vmatprep.subr.mxu0 0.0
    %327 = vmatpush2.msra.mxu0 0.0
    %328 = vmatprep.subr.mxu0 0.0
    %329 = vmatpush2.msra.mxu0 0.0
    %330 = vmatprep.subr.mxu0 0.0
    %331 = vmatpush2.msra.mxu0 0.0
    %332 = vmatprep.subr.mxu0 0.0
    %333 = vmatpush2.msra.mxu0 0.0
    %334 = vmatprep.subr.mxu0 0.0
    %335 = vmatpush2.msra.mxu0 0.0
    %336 = vmatprep.subr.mxu0 0.0
    %337 = vmatpush2.msra.mxu0 0.0
    %338 = vmatprep.subr.mxu0 0.0
    %339 = vmatpush2.msra.mxu0 0.0
    %340 = vmatprep.subr.mxu0 0.0
    %341 = vmatpush2.msra.mxu0 0.0
    %342 = vmatprep.subr.mxu0 0.0
    %343 = vmatpush2.msra.mxu0 0.0
    %344 = vmatprep.subr.mxu0 0.0
    %345 = vmatpush2.msra.mxu0 0.0
    %346 = vmatprep.subr.mxu0 0.0
    %347 = vmatpush2.msra.mxu0 0.0
    %348 = vmatprep.subr.mxu0 0.0
    %349 = vmatpush2.msra.mxu0 0.0
    %350 = vmatprep.mubr.f32.mxu0 0.0
    %v351 = vand.u32 %v55, 4294901760
    %v352 = vsub.f32 %v55, %v351
    %353 = vmatmul.mubr.f32.gmra.mxu0 %v352
    %v354 = vpop.f32.mrf.mxu0
    %v355 = vadd.f32 %v261, %v354
    %v356 = vpop.f32.mrf.mxu0
    %357 = vmatprep.mubr.f32.mxu0 0.0
    %v358 = vand.u32 %v58, 4294901760
    %v359 = vsub.f32 %v58, %v358
    %360 = vmatmul.mubr.f32.gmra.mxu0 %v359
    %v361 = vpop.f32.mrf.mxu0
    %v362 = vadd.f32 %v267, %v361
    %v363 = vpop.f32.mrf.mxu0
    %364 = vdwg.mxu0
    %365 = vmatprep.subr.mxu0 0.0
    %366 = vmatpush1.msra.mxu0 0.0
    %367 = vmatprep.subr.mxu0 0.0
    %368 = vmatpush1.msra.mxu0 0.0
    %369 = vmatprep.subr.mxu0 0.0
    %370 = vmatpush1.msra.mxu0 0.0
    %371 = vmatprep.subr.mxu0 0.0
    %372 = vmatpush1.msra.mxu0 0.0
    %373 = vmatprep.subr.mxu0 0.0
    %374 = vmatpush1.msra.mxu0 0.0
    %375 = vmatprep.subr.mxu0 0.0
    %376 = vmatpush1.msra.mxu0 0.0
    %377 = vmatprep.subr.mxu0 0.0
    %378 = vmatpush1.msra.mxu0 0.0
    %379 = vmatprep.subr.mxu0 0.0
    %380 = vmatpush1.msra.mxu0 0.0
    %381 = vmatprep.subr.mxu0 0.0
    %v382 = vand.u32 %v38, 4294901760
    %383 = vmatpush1.msra.mxu0 %v382
    %384 = vmatprep.subr.mxu0 0.0
    %v385 = vand.u32 %v37, 4294901760
    %386 = vmatpush1.msra.mxu0 %v385
    %387 = vmatprep.subr.mxu0 0.0
    %v388 = vand.u32 %v36, 4294901760
    %389 = vmatpush1.msra.mxu0 %v388
    %390 = vmatprep.subr.mxu0 0.0
    %v391 = vand.u32 %v35, 4294901760
    %392 = vmatpush1.msra.mxu0 %v391
    %393 = vmatprep.subr.mxu0 0.0
    %v394 = vand.u32 %v34, 4294901760
    %395 = vmatpush1.msra.mxu0 %v394
    %396 = vmatprep.subr.mxu0 0.0
    %v397 = vand.u32 %v33, 4294901760
    %398 = vmatpush1.msra.mxu0 %v397
    %399 = vmatprep.subr.mxu0 0.0
    %v400 = vand.u32 %v32, 4294901760
    %401 = vmatpush1.msra.mxu0 %v400
    %402 = vmatprep.subr.mxu0 0.0
    %v403 = vand.u32 %v31, 4294901760
    %404 = vmatpush1.msra.mxu0 %v403
    %405 = vmatprep.subr.mxu0 0.0
    %406 = vmatpush2.msra.mxu0 0.0
    %407 = vmatprep.subr.mxu0 0.0
    %408 = vmatpush2.msra.mxu0 0.0
    %409 = vmatprep.subr.mxu0 0.0
    %410 = vmatpush2.msra.mxu0 0.0
    %411 = vmatprep.subr.mxu0 0.0
    %412 = vmatpush2.msra.mxu0 0.0
    %413 = vmatprep.subr.mxu0 0.0
    %414 = vmatpush2.msra.mxu0 0.0
    %415 = vmatprep.subr.mxu0 0.0
    %416 = vmatpush2.msra.mxu0 0.0
    %417 = vmatprep.subr.mxu0 0.0
    %418 = vmatpush2.msra.mxu0 0.0
    %419 = vmatprep.subr.mxu0 0.0
    %420 = vmatpush2.msra.mxu0 0.0
    %421 = vmatprep.subr.mxu0 0.0
    %422 = vmatpush2.msra.mxu0 0.0
    %423 = vmatprep.subr.mxu0 0.0
    %424 = vmatpush2.msra.mxu0 0.0
    %425 = vmatprep.subr.mxu0 0.0
    %426 = vmatpush2.msra.mxu0 0.0
    %427 = vmatprep.subr.mxu0 0.0
    %428 = vmatpush2.msra.mxu0 0.0
    %429 = vmatprep.subr.mxu0 0.0
    %430 = vmatpush2.msra.mxu0 0.0
    %431 = vmatprep.subr.mxu0 0.0
    %432 = vmatpush2.msra.mxu0 0.0
    %433 = vmatprep.subr.mxu0 0.0
    %434 = vmatpush2.msra.mxu0 0.0
    %435 = vmatprep.subr.mxu0 0.0
    %436 = vmatpush2.msra.mxu0 0.0
    %437 = vmatprep.mubr.f32.mxu0 0.0
    %v438 = vand.u32 %v55, 4294901760
    %v439 = vsub.f32 %v55, %v438
    %v440 = vand.u32 %v439, 4294901760
    %441 = vmatmul.mubr.f32.gmra.mxu0 %v440
    %v442 = vpop.f32.mrf.mxu0
    %v443 = vadd.f32 %v355, %v442
    %v444 = vpop.f32.mrf.mxu0
    %445 = vmatprep.mubr.f32.mxu0 0.0
    %v446 = vand.u32 %v58, 4294901760
    %v447 = vsub.f32 %v58, %v446
    %v448 = vand.u32 %v447, 4294901760
    %449 = vmatmul.mubr.f32.gmra.mxu0 %v448
    %v450 = vpop.f32.mrf.mxu0
    %v451 = vadd.f32 %v362, %v450
    %v452 = vpop.f32.mrf.mxu0
    %453 = vdwg.mxu0
    %454 = vmatprep.subr.mxu0 0.0
    %455 = vmatpush1.msra.mxu0 0.0
    %456 = vmatprep.subr.mxu0 0.0
    %457 = vmatpush1.msra.mxu0 0.0
    %458 = vmatprep.subr.mxu0 0.0
    %459 = vmatpush1.msra.mxu0 0.0
    %460 = vmatprep.subr.mxu0 0.0
    %461 = vmatpush1.msra.mxu0 0.0
    %462 = vmatprep.subr.mxu0 0.0
    %463 = vmatpush1.msra.mxu0 0.0
    %464 = vmatprep.subr.mxu0 0.0
    %465 = vmatpush1.msra.mxu0 0.0
    %466 = vmatprep.subr.mxu0 0.0
    %467 = vmatpush1.msra.mxu0 0.0
    %468 = vmatprep.subr.mxu0 0.0
    %469 = vmatpush1.msra.mxu0 0.0
    %470 = vmatprep.subr.mxu0 0.0
    %v471 = vand.u32 %v38, 4294901760
    %v472 = vsub.f32 %v38, %v471
    %v473 = vand.u32 %v472, 4294901760
    %474 = vmatpush1.msra.mxu0 %v473
    %475 = vmatprep.subr.mxu0 0.0
    %v476 = vand.u32 %v37, 4294901760
    %v477 = vsub.f32 %v37, %v476
    %v478 = vand.u32 %v477, 4294901760
    %479 = vmatpush1.msra.mxu0 %v478
    %480 = vmatprep.subr.mxu0 0.0
    %v481 = vand.u32 %v36, 4294901760
    %v482 = vsub.f32 %v36, %v481
    %v483 = vand.u32 %v482, 4294901760
    %484 = vmatpush1.msra.mxu0 %v483
    %485 = vmatprep.subr.mxu0 0.0
    %v486 = vand.u32 %v35, 4294901760
    %v487 = vsub.f32 %v35, %v486
    %v488 = vand.u32 %v487, 4294901760
    %489 = vmatpush1.msra.mxu0 %v488
    %490 = vmatprep.subr.mxu0 0.0
    %v491 = vand.u32 %v34, 4294901760
    %v492 = vsub.f32 %v34, %v491
    %v493 = vand.u32 %v492, 4294901760
    %494 = vmatpush1.msra.mxu0 %v493
    %495 = vmatprep.subr.mxu0 0.0
    %v496 = vand.u32 %v33, 4294901760
    %v497 = vsub.f32 %v33, %v496
    %v498 = vand.u32 %v497, 4294901760
    %499 = vmatpush1.msra.mxu0 %v498
    %500 = vmatprep.subr.mxu0 0.0
    %v501 = vand.u32 %v32, 4294901760
    %v502 = vsub.f32 %v32, %v501
    %v503 = vand.u32 %v502, 4294901760
    %504 = vmatpush1.msra.mxu0 %v503
    %505 = vmatprep.subr.mxu0 0.0
    %v506 = vand.u32 %v31, 4294901760
    %v507 = vsub.f32 %v31, %v506
    %v508 = vand.u32 %v507, 4294901760
    %509 = vmatpush1.msra.mxu0 %v508
    %510 = vmatprep.subr.mxu0 0.0
    %511 = vmatpush2.msra.mxu0 0.0
    %512 = vmatprep.subr.mxu0 0.0
    %513 = vmatpush2.msra.mxu0 0.0
    %514 = vmatprep.subr.mxu0 0.0
    %515 = vmatpush2.msra.mxu0 0.0
    %516 = vmatprep.subr.mxu0 0.0
    %517 = vmatpush2.msra.mxu0 0.0
    %518 = vmatprep.subr.mxu0 0.0
    %519 = vmatpush2.msra.mxu0 0.0
    %520 = vmatprep.subr.mxu0 0.0
    %521 = vmatpush2.msra.mxu0 0.0
    %522 = vmatprep.subr.mxu0 0.0
    %523 = vmatpush2.msra.mxu0 0.0
    %524 = vmatprep.subr.mxu0 0.0
    %525 = vmatpush2.msra.mxu0 0.0
    %526 = vmatprep.subr.mxu0 0.0
    %527 = vmatpush2.msra.mxu0 0.0
    %528 = vmatprep.subr.mxu0 0.0
    %529 = vmatpush2.msra.mxu0 0.0
    %530 = vmatprep.subr.mxu0 0.0
    %531 = vmatpush2.msra.mxu0 0.0
    %532 = vmatprep.subr.mxu0 0.0
    %533 = vmatpush2.msra.mxu0 0.0
    %534 = vmatprep.subr.mxu0 0.0
    %535 = vmatpush2.msra.mxu0 0.0
    %536 = vmatprep.subr.mxu0 0.0
    %537 = vmatpush2.msra.mxu0 0.0
    %538 = vmatprep.subr.mxu0 0.0
    %539 = vmatpush2.msra.mxu0 0.0
    %540 = vmatprep.subr.mxu0 0.0
    %541 = vmatpush2.msra.mxu0 0.0
    %542 = vmatprep.mubr.f32.mxu0 0.0
    %v543 = vand.u32 %v55, 4294901760
    %544 = vmatmul.mubr.f32.gmra.mxu0 %v543
    %v545 = vpop.f32.mrf.mxu0
    %v546 = vadd.f32 %v443, %v545
    %v547 = vpop.f32.mrf.mxu0
    %548 = vmatprep.mubr.f32.mxu0 0.0
    %v549 = vand.u32 %v58, 4294901760
    %550 = vmatmul.mubr.f32.gmra.mxu0 %v549
    %v551 = vpop.f32.mrf.mxu0
    %v552 = vadd.f32 %v451, %v551
    %v553 = vpop.f32.mrf.mxu0
    %554 = vdwg.mxu0
    %555 = vmatprep.subr.mxu0 0.0
    %556 = vmatpush1.msra.mxu0 0.0
    %557 = vmatprep.subr.mxu0 0.0
    %558 = vmatpush1.msra.mxu0 0.0
    %559 = vmatprep.subr.mxu0 0.0
    %560 = vmatpush1.msra.mxu0 0.0
    %561 = vmatprep.subr.mxu0 0.0
    %562 = vmatpush1.msra.mxu0 0.0
    %563 = vmatprep.subr.mxu0 0.0
    %564 = vmatpush1.msra.mxu0 0.0
    %565 = vmatprep.subr.mxu0 0.0
    %566 = vmatpush1.msra.mxu0 0.0
    %567 = vmatprep.subr.mxu0 0.0
    %568 = vmatpush1.msra.mxu0 0.0
    %569 = vmatprep.subr.mxu0 0.0
    %570 = vmatpush1.msra.mxu0 0.0
    %571 = vmatprep.subr.mxu0 0.0
    %v572 = vand.u32 %v38, 4294901760
    %573 = vmatpush1.msra.mxu0 %v572
    %574 = vmatprep.subr.mxu0 0.0
    %v575 = vand.u32 %v37, 4294901760
    %576 = vmatpush1.msra.mxu0 %v575
    %577 = vmatprep.subr.mxu0 0.0
    %v578 = vand.u32 %v36, 4294901760
    %579 = vmatpush1.msra.mxu0 %v578
    %580 = vmatprep.subr.mxu0 0.0
    %v581 = vand.u32 %v35, 4294901760
    %582 = vmatpush1.msra.mxu0 %v581
    %583 = vmatprep.subr.mxu0 0.0
    %v584 = vand.u32 %v34, 4294901760
    %585 = vmatpush1.msra.mxu0 %v584
    %586 = vmatprep.subr.mxu0 0.0
    %v587 = vand.u32 %v33, 4294901760
    %588 = vmatpush1.msra.mxu0 %v587
    %589 = vmatprep.subr.mxu0 0.0
    %v590 = vand.u32 %v32, 4294901760
    %591 = vmatpush1.msra.mxu0 %v590
    %592 = vmatprep.subr.mxu0 0.0
    %v593 = vand.u32 %v31, 4294901760
    %594 = vmatpush1.msra.mxu0 %v593
    %595 = vmatprep.subr.mxu0 0.0
    %596 = vmatpush2.msra.mxu0 0.0
    %597 = vmatprep.subr.mxu0 0.0
    %598 = vmatpush2.msra.mxu0 0.0
    %599 = vmatprep.subr.mxu0 0.0
    %600 = vmatpush2.msra.mxu0 0.0
    %601 = vmatprep.subr.mxu0 0.0
    %602 = vmatpush2.msra.mxu0 0.0
    %603 = vmatprep.subr.mxu0 0.0
    %604 = vmatpush2.msra.mxu0 0.0
    %605 = vmatprep.subr.mxu0 0.0
    %606 = vmatpush2.msra.mxu0 0.0
    %607 = vmatprep.subr.mxu0 0.0
    %608 = vmatpush2.msra.mxu0 0.0
    %609 = vmatprep.subr.mxu0 0.0
    %610 = vmatpush2.msra.mxu0 0.0
    %611 = vmatprep.subr.mxu0 0.0
    %612 = vmatpush2.msra.mxu0 0.0
    %613 = vmatprep.subr.mxu0 0.0
    %614 = vmatpush2.msra.mxu0 0.0
    %615 = vmatprep.subr.mxu0 0.0
    %616 = vmatpush2.msra.mxu0 0.0
    %617 = vmatprep.subr.mxu0 0.0
    %618 = vmatpush2.msra.mxu0 0.0
    %619 = vmatprep.subr.mxu0 0.0
    %620 = vmatpush2.msra.mxu0 0.0
    %621 = vmatprep.subr.mxu0 0.0
    %622 = vmatpush2.msra.mxu0 0.0
    %623 = vmatprep.subr.mxu0 0.0
    %624 = vmatpush2.msra.mxu0 0.0
    %625 = vmatprep.subr.mxu0 0.0
    %626 = vmatpush2.msra.mxu0 0.0
    %627 = vmatprep.mubr.f32.mxu0 0.0
    %v628 = vand.u32 %v55, 4294901760
    %629 = vmatmul.mubr.f32.gmra.mxu0 %v628
    %v630 = vpop.f32.mrf.mxu0
    %v631 = vadd.f32 %v546, %v630
    %v632 = vpop.f32.mrf.mxu0
    %633 = vmatprep.mubr.f32.mxu0 0.0
    %v634 = vand.u32 %v58, 4294901760
    %635 = vmatmul.mubr.f32.gmra.mxu0 %v634
    %v636 = vpop.f32.mrf.mxu0
    %v637 = vadd.f32 %v552, %v636
    %v638 = vpop.f32.mrf.mxu0
    %639 = vdwg.mxu0
    %v640 = vld [vmem:[%s1] sm:$0xff]
    %v641 = vld [vmem:[%s1 + $0x8] sm:$0xff]
    %v642 = vadd.f32 %v640, %v631
    %v643 = vadd.f32 %v641, %v637
    %644 = vst [vmem:[#allocation5] sm:$0xff] %v642
    %645 = vst [vmem:[#allocation5 + $0x8] sm:$0xff] %v643
    // Predicated region
    $region18: #{tpu_custom_call.1} parent=1 // pred_check
      _
    $region19: #{tpu_custom_call.1} parent=1 // pred_check_branch
      %647 = sbr.rel (0) target = $region21
    $region20: #{tpu_custom_call.1} parent=1 // pred_region
      %s649 = ssub.s32 256, 256
      %650 = vsyncadd [#allocation4], %s649
      %s651 = sshll.u32 [#allocation5], 4
      %s652 = int_to_ptr.vmem [resolvable:$true] %s651
      %657 = dma.vmem_to_hbm [thread:$0]  %s652, 256, %s3, [#allocation4], 128, 128, 8
    $region21: #{tpu_custom_call.1} parent=1 // pred_fallthru
      _
    // Predicated region
    $region22: #{tpu_custom_call.1} parent=1 // pred_check
      _
    $region23: #{tpu_custom_call.1} parent=1 // pred_check_branch
      %659 = sbr.rel (0) target = $region25
    $region24: #{tpu_custom_call.1} parent=1 // pred_region
      %660 = dma.done [#allocation4], 256
    $region25: #{tpu_custom_call.1} parent=1 // pred_fallthru
      _
    %661 = vsyncpa [#allocation3], 1
    %662 = vsyncpa [#allocation4], 1

</llo_original>
